<compile_context>
chip_gen: v7x
topology: tpu7x:2x2x1
jax: 0.10.0
libtpu: 0.0.40
codegen_flags: <defaults>
</compile_context>

<pallas_src>
import functools

import jax
import jax.numpy as jnp
from jax.experimental import pallas as pl
from jax.experimental.pallas import tpu as pltpu


def _cfb_kernel(p_ref, w_ref, b_ref, o_ref, *, Cout, HW):
    # p_ref : (K, B*HW)     ready im2col slab, tap-major rows, lane-dense cols
    # w_ref : (2*Cout, K)   rows = [vgg | res_main (+ folded 1x1 shortcut)]
    # b_ref : (2*Cout, 1)   [b_vgg | b_res_main + b_res_short]
    # o_ref : (B, Cout, HW) C = (V + R) / 2, lane-dense output
    acc = jnp.dot(w_ref[...], p_ref[...],
                  preferred_element_type=jnp.float32)        # (2*Cout, B*HW)
    acc = acc + b_ref[...]                                   # lane-broadcast bias

    v = acc[:Cout]                                           # V
    r = jnp.maximum(acc[Cout:], 0.0)                         # R = relu(...)
    c = (v + r) * 0.5                                        # C

    # Per-image stores: lane slices at 128-aligned offsets, full-width vst.
    B = o_ref.shape[0]
    for b in range(B):
        o_ref[b] = c[:, b * HW:(b + 1) * HW].astype(o_ref.dtype)


def prepare_cfb_params(params):
    """One-time weight/bias prep (hoisted out of the per-forward path)."""
    Cout = params["b_vgg"].shape[-1]
    Cin = params["w_vgg"].shape[1]
    K = 9 * Cin
    # Fold the 1x1 shortcut exactly into the centre tap (dy=1,dx=1) of the
    # residual 3x3 conv, then stack vgg + residual along output channels.
    w_res = params["w_res_main"].at[4].add(params["w_res_short"])
    w_cat = jnp.concatenate([params["w_vgg"], w_res], axis=-1)  # (9, Cin, 2*Cout)
    w_t = jnp.transpose(w_cat.reshape(K, 2 * Cout))             # (2*Cout, K)
    b_cat = jnp.concatenate(
        [params["b_vgg"], params["b_res_main"] + params["b_res_short"]],
        axis=-1).reshape(2 * Cout, 1)                           # (2*Cout, 1)
    return w_t, b_cat


@jax.jit
def cfb_forward(x_nchw, w_t, b_cat):
    """x_nchw: (B, Cin, H, W) f32; w_t/b_cat from prepare_cfb_params.

    Returns C with shape (B, Cout, H, W)."""
    B, Cin, H, W = x_nchw.shape
    two_cout, K = w_t.shape
    Cout = two_cout // 2
    HW = H * W

    # im2col in the jitted wrapper (layout plumbing; fuses with the pad under
    # jit). Built directly in (K, B*HW) orientation so the kernel needs no
    # relayout work and no explicit K zero-padding.
    x_pad = jnp.pad(x_nchw, ((0, 0), (0, 0), (1, 1), (1, 1)))
    taps = jnp.stack(
        [x_pad[:, :, dy:dy + H, dx:dx + W]
         for dy in range(3) for dx in range(3)], axis=0)        # (9, B, Cin, H, W)
    patch_t = jnp.transpose(taps, (0, 2, 1, 3, 4)).reshape(K, B * HW)

    kernel = functools.partial(_cfb_kernel, Cout=Cout, HW=HW)

    flops = 2 * K * two_cout * B * HW
    bytes_accessed = 4 * (patch_t.size + w_t.size + b_cat.size + B * Cout * HW)

    # TODO(synk): for large B or H*W, add a batch/row-tile grid axis marked
    # "parallel" (pipelined BlockSpecs; shards across v7x's 2 TensorCores) and
    # re-derive tile sizes against v7x's 64 MiB VMEM; at this tiny size one
    # grid step is fastest.
    out = pl.pallas_call(
        kernel,
        out_shape=jax.ShapeDtypeStruct((B, Cout, HW), jnp.float32),
        grid_spec=pltpu.PrefetchScalarGridSpec(
            num_scalar_prefetch=0,
            grid=(1,),
            in_specs=[
                pl.BlockSpec((K, B * HW), lambda i: (0, 0)),
                pl.BlockSpec((two_cout, K), lambda i: (0, 0)),
                pl.BlockSpec((two_cout, 1), lambda i: (0, 0)),
            ],
            out_specs=pl.BlockSpec((B, Cout, HW), lambda i: (0, 0, 0)),
        ),
        compiler_params=pltpu.CompilerParams(
            dimension_semantics=("arbitrary",)),
        cost_estimate=pl.CostEstimate(flops=flops, transcendentals=0,
                                      bytes_accessed=bytes_accessed),
    )(patch_t, w_t, b_cat)

    # (B, Cout, HW) is already NCHW-ordered; only a trailing reshape remains.
    return out.reshape(B, Cout, H, W)


def _init_params(key, Cin, Cout):
    """Deterministic synthetic weights (no checkpoint)."""
    k = jax.random.split(key, 6)
    scale3 = 1.0 / jnp.sqrt(Cin * 9.0)
    scale1 = 1.0 / jnp.sqrt(Cin * 1.0)
    # Weights stored tap-major: (ky*3+kx, Cin, Cout).
    w_vgg = jax.random.uniform(k[0], (9, Cin, Cout), jnp.float32,
                               -scale3, scale3)
    w_res_main = jax.random.uniform(k[1], (9, Cin, Cout), jnp.float32,
                                    -scale3, scale3)
    w_res_short = jax.random.uniform(k[2], (Cin, Cout), jnp.float32,
                                     -scale1, scale1)
    b_vgg = jax.random.uniform(k[3], (1, Cout), jnp.float32, -scale3, scale3)
    b_res_main = jax.random.uniform(k[4], (1, Cout), jnp.float32,
                                    -scale3, scale3)
    b_res_short = jax.random.uniform(k[5], (1, Cout), jnp.float32,
                                     -scale1, scale1)
    return dict(w_vgg=w_vgg, b_vgg=b_vgg,
                w_res_main=w_res_main, b_res_main=b_res_main,
                w_res_short=w_res_short, b_res_short=b_res_short)


def _reference(x_nchw, params):
    """Plain-JAX reference (lax conv) for a correctness check."""
    def conv3x3(x, w_tap, b):
        w = w_tap.reshape(3, 3, w_tap.shape[1], w_tap.shape[2])
        y = jax.lax.conv_general_dilated(
            x, w, window_strides=(1, 1), padding="SAME",
            dimension_numbers=("NCHW", "HWIO", "NCHW"))
        return y + b.reshape(1, -1, 1, 1)

    def conv1x1(x, w, b):
        y = jax.lax.conv_general_dilated(
            x, w.reshape(1, 1, *w.shape), window_strides=(1, 1),
            padding="VALID", dimension_numbers=("NCHW", "HWIO", "NCHW"))
        return y + b.reshape(1, -1, 1, 1)

    v = conv3x3(x_nchw, params["w_vgg"], params["b_vgg"])
    r = jnp.maximum(
        conv3x3(x_nchw, params["w_res_main"], params["b_res_main"])
        + conv1x1(x_nchw, params["w_res_short"], params["b_res_short"]), 0.0)
    return (v + r) / 2.0


if __name__ == "__main__":
    B, Cin, Cout, H, W = 2, 4, 8, 16, 16
    key = jax.random.PRNGKey(0)
    kx, kp = jax.random.split(key)
    x = jax.random.normal(kx, (B, Cin, H, W), jnp.float32)
    params = _init_params(kp, Cin, Cout)

    # One-time prep (outside the per-forward path).
    w_t, b_cat = prepare_cfb_params(params)
    w_t, b_cat = jax.block_until_ready((w_t, b_cat))

    out = jax.block_until_ready(cfb_forward(x, w_t, b_cat))

    ref = _reference(x, params)
    assert out.shape == (B, Cout, H, W)
    assert jnp.allclose(out, ref, atol=1e-4, rtol=1e-4), "mismatch vs reference"

    print("KERNEL_OK")
</pallas_src>

<mosaic_0001>
module attributes {stable_mosaic.version = 11 : i64} {
  func.func @_cfb_kernel(%arg0: i32, %arg1: memref<36x512xf32, #tpu.memory_space<vmem>>, %arg2: memref<16x36xf32, #tpu.memory_space<vmem>>, %arg3: memref<16x1xf32, #tpu.memory_space<vmem>>, %arg4: memref<2x8x256xf32, #tpu.memory_space<vmem>>) attributes {dimension_semantics = [#tpu.dimension_semantics<arbitrary>], iteration_bounds = array<i64: 1>, scalar_prefetch = 0 : i64, scratch_operands = 0 : i64, tpu.core_type = #tpu.core_type<tc>, window_params = [{pipeline_mode = #tpu.pipeline_mode<synchronous>, transform_indices = @transform_0, window_bounds = array<i64: 36, 512>}, {pipeline_mode = #tpu.pipeline_mode<synchronous>, transform_indices = @transform_1, window_bounds = array<i64: 16, 36>}, {pipeline_mode = #tpu.pipeline_mode<synchronous>, transform_indices = @transform_2, window_bounds = array<i64: 16, 1>}, {pipeline_mode = #tpu.pipeline_mode<synchronous>, transform_indices = @transform_3, window_bounds = array<i64: 2, 8, 256>}]} {
    %c0 = arith.constant 0 : index
    %c0_0 = arith.constant 0 : index
    %0 = vector.load %arg2[%c0, %c0_0] : memref<16x36xf32, #tpu.memory_space<vmem>>, vector<16x36xf32>
    %c0_1 = arith.constant 0 : index
    %c0_2 = arith.constant 0 : index
    %1 = vector.load %arg1[%c0_1, %c0_2] : memref<36x512xf32, #tpu.memory_space<vmem>>, vector<36x512xf32>
    %cst = arith.constant dense<0.000000e+00> : vector<16x512xf32>
    %2 = tpu.matmul %0, %1, %cst {dimension_numbers = #tpu.dot_dimension_numbers<[1], [0], [0], [1], [0, 0, 1, 1], [], []>} : vector<16x36xf32>, vector<36x512xf32>, vector<16x512xf32> -> vector<16x512xf32>
    %c0_3 = arith.constant 0 : index
    %c0_4 = arith.constant 0 : index
    %3 = vector.load %arg3[%c0_3, %c0_4] : memref<16x1xf32, #tpu.memory_space<vmem>>, vector<16x1xf32>
    %4 = vector.broadcast %3 : vector<16x1xf32> to vector<16x512xf32>
    %5 = arith.addf %2, %4 : vector<16x512xf32>
    %6 = vector.extract_strided_slice %5 {offsets = [0, 0], sizes = [8, 512], strides = [1, 1]} : vector<16x512xf32> to vector<8x512xf32>
    %7 = vector.extract_strided_slice %5 {offsets = [8, 0], sizes = [8, 512], strides = [1, 1]} : vector<16x512xf32> to vector<8x512xf32>
    %cst_5 = arith.constant 0.000000e+00 : f32
    %8 = vector.broadcast %cst_5 : f32 to vector<8x512xf32>
    %9 = arith.maximumf %7, %8 : vector<8x512xf32>
    %10 = arith.addf %6, %9 : vector<8x512xf32>
    %cst_6 = arith.constant 5.000000e-01 : f32
    %11 = vector.broadcast %cst_6 : f32 to vector<8x512xf32>
    %12 = arith.mulf %10, %11 : vector<8x512xf32>
    %13 = vector.extract_strided_slice %12 {offsets = [0, 0], sizes = [8, 256], strides = [1, 1]} : vector<8x512xf32> to vector<8x256xf32>
    %c0_7 = arith.constant 0 : index
    %c0_8 = arith.constant 0 : index
    %c0_9 = arith.constant 0 : index
    %14 = vector.load %arg4[%c0_7, %c0_8, %c0_9] : memref<2x8x256xf32, #tpu.memory_space<vmem>>, vector<1x8x256xf32>
    %15 = vector.shape_cast %14 : vector<1x8x256xf32> to vector<8x256xf32>
    %16 = vector.shape_cast %13 : vector<8x256xf32> to vector<1x8x256xf32>
    tpu.vector_store %arg4[%c0_7, %c0_8, %c0_9], %16 {strides = array<i32>} : memref<2x8x256xf32, #tpu.memory_space<vmem>>, vector<1x8x256xf32>,
    %17 = vector.extract_strided_slice %12 {offsets = [0, 256], sizes = [8, 256], strides = [1, 1]} : vector<8x512xf32> to vector<8x256xf32>
    %c1 = arith.constant 1 : index
    %c0_10 = arith.constant 0 : index
    %c0_11 = arith.constant 0 : index
    %18 = vector.load %arg4[%c1, %c0_10, %c0_11] : memref<2x8x256xf32, #tpu.memory_space<vmem>>, vector<1x8x256xf32>
    %19 = vector.shape_cast %18 : vector<1x8x256xf32> to vector<8x256xf32>
    %20 = vector.shape_cast %17 : vector<8x256xf32> to vector<1x8x256xf32>
    tpu.vector_store %arg4[%c1, %c0_10, %c0_11], %20 {strides = array<i32>} : memref<2x8x256xf32, #tpu.memory_space<vmem>>, vector<1x8x256xf32>,
    return
  }
  func.func @transform_0(%arg0: i32) -> (i32, i32) {
    %c0_i32 = arith.constant 0 : i32
    %c0_i32_0 = arith.constant 0 : i32
    %c0_i32_1 = arith.constant 0 : i32
    return %c0_i32, %c0_i32_0 : i32, i32
  }
  func.func @transform_1(%arg0: i32) -> (i32, i32) {
    %c0_i32 = arith.constant 0 : i32
    %c0_i32_0 = arith.constant 0 : i32
    %c0_i32_1 = arith.constant 0 : i32
    return %c0_i32, %c0_i32_0 : i32, i32
  }
  func.func @transform_2(%arg0: i32) -> (i32, i32) {
    %c0_i32 = arith.constant 0 : i32
    %c0_i32_0 = arith.constant 0 : i32
    %c0_i32_1 = arith.constant 0 : i32
    return %c0_i32, %c0_i32_0 : i32, i32
  }
  func.func @transform_3(%arg0: i32) -> (i32, i32, i32) {
    %c0_i32 = arith.constant 0 : i32
    %c0_i32_0 = arith.constant 0 : i32
    %c0_i32_1 = arith.constant 0 : i32
    %c0_i32_2 = arith.constant 0 : i32
    return %c0_i32, %c0_i32_0, %c0_i32_1 : i32, i32, i32
  }
}

</mosaic_0001>

<llo_original>
// kernel: cfb_forward.1
$region0: #{cfb_forward.1}
  #allocation0 [shape = 'u32[]', space=smem, size = 0x4, offset = 0x4, fixed_abs, tag = 'smem constant byte address 0x4 - core index']
  #allocation1 [shape = 'u32[144,128]{1,0:T(1,128)}', space=vmem, size = 0x12000, scoped, tag = 'internal scratch']
  %s0 = inlined_call_operand.vmem [shape: f32[36,512], index: 0, kind: input, shape index: {}]
  %s1 = inlined_call_operand.vmem [shape: f32[16,36], index: 1, kind: input, shape index: {}]
  %s2 = inlined_call_operand.vmem [shape: f32[16,1], index: 2, kind: input, shape index: {}]
  %s3 = inlined_call_operand.vmem [shape: f32[2,8,256], index: 3, kind: output, shape index: {}]
  %s4 = sld [smem:[#allocation0]]
  $region22: #{cfb_forward.1} parent=0
    _
  %s6 = ssub.s32 1, %s4
  %s7 = scalar_select 0, %s6, %s4
  // Predicated region
  $region2: #{cfb_forward.1} parent=0 // pred_check
    _
  $region3: #{cfb_forward.1} parent=0 // pred_check_branch
    %9 = sbr.rel (0) target = $region5
  $region4: #{cfb_forward.1} parent=0 // pred_region
    _
  $region5: #{cfb_forward.1} parent=0 // pred_fallthru
    _
  // Predicated region
  $region6: #{cfb_forward.1} parent=0 // pred_check
    _
  $region7: #{cfb_forward.1} parent=0 // pred_check_branch
    %11 = sbr.rel (0) target = $region9
  $region8: #{cfb_forward.1} parent=0 // pred_region
    _
  $region9: #{cfb_forward.1} parent=0 // pred_fallthru
    _
  // Predicated region
  $region10: #{cfb_forward.1} parent=0 // pred_check
    _
  $region11: #{cfb_forward.1} parent=0 // pred_check_branch
    %13 = sbr.rel (0) target = $region13
  $region12: #{cfb_forward.1} parent=0 // pred_region
    _
  $region13: #{cfb_forward.1} parent=0 // pred_fallthru
    _
  %v14 = vld [vmem:[%s1] sm:$0xff]
  %v15 = vld [vmem:[%s1 + $0x8] sm:$0xff]
  %v16 = vld [vmem:[%s0] sm:$0xff]
  %v17 = vld [vmem:[%s0 + $0x8] sm:$0xff]
  %v18 = vld [vmem:[%s0 + $0x10] sm:$0xff]
  %v19 = vld [vmem:[%s0 + $0x18] sm:$0xff]
  %v20 = vld [vmem:[%s0 + $0x20] sm:$0xff]
  %v21 = vld [vmem:[%s0 + $0x28] sm:$0xff]
  %v22 = vld [vmem:[%s0 + $0x30] sm:$0xff]
  %v23 = vld [vmem:[%s0 + $0x38] sm:$0xff]
  %v24 = vld [vmem:[%s0 + $0x40] sm:$0xff]
  %v25 = vld [vmem:[%s0 + $0x48] sm:$0xff]
  %v26 = vld [vmem:[%s0 + $0x50] sm:$0xff]
  %v27 = vld [vmem:[%s0 + $0x58] sm:$0xff]
  %v28 = vld [vmem:[%s0 + $0x60] sm:$0xff]
  %v29 = vld [vmem:[%s0 + $0x68] sm:$0xff]
  %v30 = vld [vmem:[%s0 + $0x70] sm:$0xff]
  %v31 = vld [vmem:[%s0 + $0x78] sm:$0xff]
  %v32 = vld [vmem:[%s0 + $0x80] sm:$0xf]
  %v33 = vld [vmem:[%s0 + $0x88] sm:$0xf]
  %v34 = vld [vmem:[%s0 + $0x90] sm:$0xf]
  %v35 = vld [vmem:[%s0 + $0x98] sm:$0xf]
  %v36 = vld [vmem:[%s2] sm:$0xff]
  %v37 = vld [vmem:[%s2 + $0x8] sm:$0xff]
  %39 = vset.pattern.permute.xlu0 0
  %40 = vperm.xlu0 %39, %v36
  %v41 = vpop.permute.xlu0 %40
  %44 = vset.pattern.permute.xlu0 0
  %45 = vperm.xlu0 %44, %v37
  %v46 = vpop.permute.xlu0 %45
  %vm48 = vcmask 293888
  %v50 = vsel %vm48, %v14, 0
  %v53 = vsel %vm48, %v15, 0
  %vm55 = vcmask 1043456
  %v57 = vsel %vm55, %v32, 0
  %v60 = vsel %vm55, %v33, 0
  %v63 = vsel %vm55, %v34, 0
  %v66 = vsel %vm55, %v35, 0
  %68 = vmatprep.subr.mxu0 %v17
  %69 = vmatpush1.msra.mxu0 %v16
  %70 = vmatprep.subr.mxu0 %v21
  %71 = vmatpush1.msra.mxu0 %v20
  %72 = vmatprep.subr.mxu0 %v25
  %73 = vmatpush1.msra.mxu0 %v24
  %74 = vmatprep.subr.mxu0 %v29
  %75 = vmatpush1.msra.mxu0 %v28
  %76 = vmatprep.subr.mxu0 %v60
  %77 = vmatpush1.msra.mxu0 %v57
  %78 = vmatprep.subr.mxu0 0.0
  %79 = vmatpush1.msra.mxu0 0.0
  %80 = vmatprep.subr.mxu0 0.0
  %81 = vmatpush1.msra.mxu0 0.0
  %82 = vmatprep.subr.mxu0 0.0
  %83 = vmatpush1.msra.mxu0 0.0
  %84 = vmatprep.subr.mxu0 0.0
  %85 = vmatpush1.msra.mxu0 0.0
  %86 = vmatprep.subr.mxu0 0.0
  %87 = vmatpush1.msra.mxu0 0.0
  %88 = vmatprep.subr.mxu0 0.0
  %89 = vmatpush1.msra.mxu0 0.0
  %90 = vmatprep.subr.mxu0 0.0
  %91 = vmatpush1.msra.mxu0 0.0
  %92 = vmatprep.subr.mxu0 0.0
  %93 = vmatpush1.msra.mxu0 0.0
  %94 = vmatprep.subr.mxu0 0.0
  %95 = vmatpush1.msra.mxu0 0.0
  %96 = vmatprep.subr.mxu0 0.0
  %97 = vmatpush1.msra.mxu0 0.0
  %98 = vmatprep.subr.mxu0 0.0
  %99 = vmatpush1.msra.mxu0 0.0
  %100 = vmatprep.subr.mxu0 0.0
  %101 = vmatpush1.msra.mxu0 0.0
  %102 = vmatprep.subr.mxu0 0.0
  %103 = vmatpush1.msra.mxu0 0.0
  %104 = vmatprep.subr.mxu0 0.0
  %105 = vmatpush1.msra.mxu0 0.0
  %106 = vmatprep.subr.mxu0 0.0
  %107 = vmatpush1.msra.mxu0 0.0
  %108 = vmatprep.subr.mxu0 0.0
  %109 = vmatpush1.msra.mxu0 0.0
  %110 = vmatprep.subr.mxu0 0.0
  %111 = vmatpush1.msra.mxu0 0.0
  %112 = vmatprep.subr.mxu0 0.0
  %113 = vmatpush1.msra.mxu0 0.0
  %114 = vmatprep.subr.mxu0 0.0
  %115 = vmatpush1.msra.mxu0 0.0
  %116 = vmatprep.subr.mxu0 0.0
  %117 = vmatpush1.msra.mxu0 0.0
  %118 = vmatprep.subr.mxu0 0.0
  %119 = vmatpush1.msra.mxu0 0.0
  %120 = vmatprep.subr.mxu0 0.0
  %121 = vmatpush1.msra.mxu0 0.0
  %122 = vmatprep.subr.mxu0 0.0
  %123 = vmatpush1.msra.mxu0 0.0
  %124 = vmatprep.subr.mxu0 0.0
  %125 = vmatpush1.msra.mxu0 0.0
  %126 = vmatprep.subr.mxu0 0.0
  %127 = vmatpush1.msra.mxu0 0.0
  %128 = vmatprep.subr.mxu0 0.0
  %129 = vmatpush1.msra.mxu0 0.0
  %130 = vmatprep.subr.mxu0 0.0
  %131 = vmatpush1.msra.mxu0 0.0
  %132 = vmatprep.mubr.f32.mxu0 0.0
  %133 = vmatmul.mubr.f32.gmra.mrb[0].mxu0 %v50
  %v134 = vpop.f32.mrb[0].mxu0
  %v135 = vadd.f32 %v41, %v134
  %v136 = vpop.f32.mrb[0].mxu0
  %v137 = vadd.f32 %v41, %v136
  %138 = vmatprep.mubr.f32.mxu0 0.0
  %139 = vmatmul.mubr.f32.gmra.mrb[0].mxu0 %v53
  %v140 = vpop.f32.mrb[0].mxu0
  %v141 = vadd.f32 %v46, %v140
  %v142 = vpop.f32.mrb[0].mxu0
  %v143 = vadd.f32 %v46, %v142
  %144 = vdwg.mxu0
  %145 = vmatprep.subr.mxu0 %v19
  %146 = vmatpush1.msra.mxu0 %v18
  %147 = vmatprep.subr.mxu0 %v23
  %148 = vmatpush1.msra.mxu0 %v22
  %149 = vmatprep.subr.mxu0 %v27
  %150 = vmatpush1.msra.mxu0 %v26
  %151 = vmatprep.subr.mxu0 %v31
  %152 = vmatpush1.msra.mxu0 %v30
  %153 = vmatprep.subr.mxu0 %v66
  %154 = vmatpush1.msra.mxu0 %v63
  %155 = vmatprep.subr.mxu0 0.0
  %156 = vmatpush1.msra.mxu0 0.0
  %157 = vmatprep.subr.mxu0 0.0
  %158 = vmatpush1.msra.mxu0 0.0
  %159 = vmatprep.subr.mxu0 0.0
  %160 = vmatpush1.msra.mxu0 0.0
  %161 = vmatprep.subr.mxu0 0.0
  %162 = vmatpush1.msra.mxu0 0.0
  %163 = vmatprep.subr.mxu0 0.0
  %164 = vmatpush1.msra.mxu0 0.0
  %165 = vmatprep.subr.mxu0 0.0
  %166 = vmatpush1.msra.mxu0 0.0
  %167 = vmatprep.subr.mxu0 0.0
  %168 = vmatpush1.msra.mxu0 0.0
  %169 = vmatprep.subr.mxu0 0.0
  %170 = vmatpush1.msra.mxu0 0.0
  %171 = vmatprep.subr.mxu0 0.0
  %172 = vmatpush1.msra.mxu0 0.0
  %173 = vmatprep.subr.mxu0 0.0
  %174 = vmatpush1.msra.mxu0 0.0
  %175 = vmatprep.subr.mxu0 0.0
  %176 = vmatpush1.msra.mxu0 0.0
  %177 = vmatprep.subr.mxu0 0.0
  %178 = vmatpush1.msra.mxu0 0.0
  %179 = vmatprep.subr.mxu0 0.0
  %180 = vmatpush1.msra.mxu0 0.0
  %181 = vmatprep.subr.mxu0 0.0
  %182 = vmatpush1.msra.mxu0 0.0
  %183 = vmatprep.subr.mxu0 0.0
  %184 = vmatpush1.msra.mxu0 0.0
  %185 = vmatprep.subr.mxu0 0.0
  %186 = vmatpush1.msra.mxu0 0.0
  %187 = vmatprep.subr.mxu0 0.0
  %188 = vmatpush1.msra.mxu0 0.0
  %189 = vmatprep.subr.mxu0 0.0
  %190 = vmatpush1.msra.mxu0 0.0
  %191 = vmatprep.subr.mxu0 0.0
  %192 = vmatpush1.msra.mxu0 0.0
  %193 = vmatprep.subr.mxu0 0.0
  %194 = vmatpush1.msra.mxu0 0.0
  %195 = vmatprep.subr.mxu0 0.0
  %196 = vmatpush1.msra.mxu0 0.0
  %197 = vmatprep.subr.mxu0 0.0
  %198 = vmatpush1.msra.mxu0 0.0
  %199 = vmatprep.subr.mxu0 0.0
  %200 = vmatpush1.msra.mxu0 0.0
  %201 = vmatprep.subr.mxu0 0.0
  %202 = vmatpush1.msra.mxu0 0.0
  %203 = vmatprep.subr.mxu0 0.0
  %204 = vmatpush1.msra.mxu0 0.0
  %205 = vmatprep.subr.mxu0 0.0
  %206 = vmatpush1.msra.mxu0 0.0
  %207 = vmatprep.subr.mxu0 0.0
  %208 = vmatpush1.msra.mxu0 0.0
  %209 = vmatprep.mubr.f32.mxu0 0.0
  %210 = vmatmul.mubr.f32.gmra.mrb[0].mxu0 %v50
  %v211 = vpop.f32.mrb[0].mxu0
  %v212 = vadd.f32 %v41, %v211
  %v213 = vpop.f32.mrb[0].mxu0
  %v214 = vadd.f32 %v41, %v213
  %215 = vmatprep.mubr.f32.mxu0 0.0
  %216 = vmatmul.mubr.f32.gmra.mrb[0].mxu0 %v53
  %v217 = vpop.f32.mrb[0].mxu0
  %v218 = vadd.f32 %v46, %v217
  %v219 = vpop.f32.mrb[0].mxu0
  %v220 = vadd.f32 %v46, %v219
  %221 = vdwg.mxu0
  %v222 = vmax.f32 %v141, 0.0
  %v223 = vmax.f32 %v143, 0.0
  %v224 = vmax.f32 %v218, 0.0
  %v225 = vmax.f32 %v220, 0.0
  %v226 = vadd.f32 %v135, %v222
  %v227 = vadd.f32 %v137, %v223
  %v228 = vadd.f32 %v212, %v224
  %v229 = vadd.f32 %v214, %v225
  %v230 = vmul.f32 %v226, 0.5
  %v231 = vmul.f32 %v227, 0.5
  %v232 = vmul.f32 %v228, 0.5
  %v233 = vmul.f32 %v229, 0.5
  %234 = vst [vmem:[%s3] sm:$0xff] %v230
  %235 = vst [vmem:[%s3 + $0x8] sm:$0xff] %v231
  %s236 = scalar_lea.vmem %s3, 16
  %237 = vst [vmem:[%s236] sm:$0xff] %v232
  %238 = vst [vmem:[%s236 + $0x8] sm:$0xff] %v233
  // Predicated region
  $region14: #{cfb_forward.1} parent=0 // pred_check
    _
  $region15: #{cfb_forward.1} parent=0 // pred_check_branch
    %240 = sbr.rel (0) target = $region17
  $region16: #{cfb_forward.1} parent=0 // pred_region
    _
  $region17: #{cfb_forward.1} parent=0 // pred_fallthru
    _
  // Predicated region
  $region18: #{cfb_forward.1} parent=0 // pred_check
    _
  $region19: #{cfb_forward.1} parent=0 // pred_check_branch
    %242 = sbr.rel (0) target = $region21
  $region20: #{cfb_forward.1} parent=0 // pred_region
    _
  $region21: #{cfb_forward.1} parent=0 // pred_fallthru
    _

</llo_original>
